<compile_context>
chip_gen: v6e
topology: v6e:2x2x1
jax: 0.10.0
libtpu: 0.0.40
codegen_flags: <defaults>
</compile_context>

<pallas_src>
import jax
import jax.numpy as jnp
from jax.experimental import pallas as pl
from jax.experimental.pallas import tpu as pltpu


def conv1x1_kernel(x_ref, w_ref, b_ref, o_ref):
    # x_ref: (BN, Cin, tm)  w_ref: (Cout, Cin)  b_ref: (Cout, 1)  o_ref: (BN, Cout, tm)
    w = w_ref[...]
    b = b_ref[...]
    for n in range(x_ref.shape[0]):           # BN is a small static constant
        acc = jnp.dot(w, x_ref[n], preferred_element_type=jnp.float32)
        o_ref[n] = (acc + b).astype(o_ref.dtype)


def orange_forward(x_nchw, weight, bias, *,
                   target_step_bytes=2 << 20, vmem_budget_bytes=12 << 20):
    """1x1 Conv2d as a Pallas matmul with the spatial axis on lanes.

    x_nchw: (N, Cin, H, W)   weight: (Cout, Cin, 1, 1)   bias: (Cout,)
    returns: (N, Cout, H, W)
    """
    N, Cin, H, W = x_nchw.shape
    Cout = weight.shape[0]
    HW = H * W

    x = x_nchw.reshape(N, Cin, HW)                   # free reshape, no transpose
    w2 = weight.reshape(Cout, Cin)
    b2 = bias.reshape(Cout, 1).astype(jnp.float32)   # resident f32 bias

    itemsize = jnp.dtype(x_nchw.dtype).itemsize
    w_bytes = Cout * Cin * jnp.dtype(w2.dtype).itemsize + Cout * 4
    px_bytes_img = (Cin + Cout) * itemsize           # in+out activation bytes / pixel / image

    # Fold the whole batch into the block when a single image can't fill a step
    # (and the folded, double-buffered full row still fits the VMEM budget).
    fold = (px_bytes_img * HW < target_step_bytes and
            2 * px_bytes_img * HW * N + w_bytes <= vmem_budget_bytes)
    BN = N if fold else 1
    px_bytes = px_bytes_img * BN

    # Spatial tile: hit the per-step byte target, stay under the VMEM budget
    # (x2 for double buffering), keep >= 128 lanes, align to 128 when tiled.
    tm_budget = max(128, (vmem_budget_bytes - w_bytes) // (2 * px_bytes))
    tm = max(128, min(target_step_bytes // px_bytes, tm_budget))
    if tm >= HW:
        tm = HW                                      # full-dim block is always legal
    else:
        tm = (tm // 128) * 128
    grid_hw = pl.cdiv(HW, tm)

    # v7x has 2 TensorCores: keep at least 2 parallel grid steps when HW allows.
    if (N // BN) * grid_hw < 2 and HW >= 256:
        tm = ((pl.cdiv(HW, 2) + 127) // 128) * 128
        grid_hw = pl.cdiv(HW, tm)

    grid = (N // BN, grid_hw)

    cost = pl.CostEstimate(
        flops=2 * N * HW * Cin * Cout,
        transcendentals=0,
        bytes_accessed=N * HW * (Cin + Cout) * itemsize + w_bytes,
    )

    out = pl.pallas_call(
        conv1x1_kernel,
        out_shape=jax.ShapeDtypeStruct((N, Cout, HW), x_nchw.dtype),
        grid_spec=pltpu.PrefetchScalarGridSpec(
            num_scalar_prefetch=0,
            grid=grid,
            in_specs=[
                pl.BlockSpec((BN, Cin, tm), lambda n, t: (n, 0, t)),   # activations
                pl.BlockSpec((Cout, Cin), lambda n, t: (0, 0)),        # resident W
                pl.BlockSpec((Cout, 1), lambda n, t: (0, 0)),          # resident bias
            ],
            out_specs=pl.BlockSpec((BN, Cout, tm), lambda n, t: (n, 0, t)),
        ),
        compiler_params=pltpu.CompilerParams(
            dimension_semantics=("parallel", "parallel")),
        cost_estimate=cost,
    )(x, w2, b2)

    return out.reshape(N, Cout, H, W)


if __name__ == "__main__":
    key = jax.random.PRNGKey(0)
    k_x, k_w, k_b = jax.random.split(key, 3)

    def make_params(cin, cout, kw, kb):
        bound = 1.0 / (cin ** 0.5)
        weight = jax.random.uniform(kw, (cout, cin, 1, 1),
                                    minval=-bound, maxval=bound, dtype=jnp.float32)
        bias = jax.random.uniform(kb, (cout,),
                                  minval=-bound, maxval=bound, dtype=jnp.float32)
        return weight, bias

    def ref_conv1x1(x, weight, bias):
        w_mat = weight.reshape(weight.shape[0], weight.shape[1])
        return jnp.einsum("nchw,oc->nohw", x, w_mat) + bias[None, :, None, None]

    # 1) Real `orangef` channel counts [64 -> n_class=13]: folded batch, exact tiles.
    N, Cin, Cout, H, W = 2, 64, 13, 16, 16
    weight, bias = make_params(Cin, Cout, k_w, k_b)
    x = jax.random.normal(k_x, (N, Cin, H, W), dtype=jnp.float32)
    out = jax.block_until_ready(orange_forward(x, weight, bias))
    assert out.shape == (N, Cout, H, W)
    assert jnp.allclose(out, ref_conv1x1(x, weight, bias), atol=1e-4, rtol=1e-4)

    # 2) Ragged spatial tiles (HW=900, not a multiple of 128), folded batch.
    weight2, bias2 = make_params(4, 8, k_w, k_b)
    x2 = jax.random.normal(k_x, (2, 4, 30, 30), dtype=jnp.float32)
    out2 = jax.block_until_ready(orange_forward(x2, weight2, bias2))
    assert out2.shape == (2, 8, 30, 30)
    assert jnp.allclose(out2, ref_conv1x1(x2, weight2, bias2), atol=1e-4, rtol=1e-4)

    # 3) Larger image: per-image (unfolded) tiling path with a ragged last tile.
    x3 = jax.random.normal(k_x, (2, 4, 256, 256), dtype=jnp.float32)
    out3 = jax.block_until_ready(orange_forward(x3, weight2, bias2))
    assert out3.shape == (2, 8, 256, 256)
    assert jnp.allclose(out3, ref_conv1x1(x3, weight2, bias2), atol=1e-4, rtol=1e-4)

    print("KERNEL_OK")
</pallas_src>

<mosaic_0001>
module attributes {stable_mosaic.version = 11 : i64} {
  func.func @conv1x1_kernel(%arg0: i32, %arg1: i32, %arg2: memref<2x64x128xf32, #tpu.memory_space<vmem>>, %arg3: memref<13x64xf32, #tpu.memory_space<vmem>>, %arg4: memref<13x1xf32, #tpu.memory_space<vmem>>, %arg5: memref<2x13x128xf32, #tpu.memory_space<vmem>>) attributes {dimension_semantics = [#tpu.dimension_semantics<parallel>, #tpu.dimension_semantics<parallel>], iteration_bounds = array<i64: 1, 2>, scalar_prefetch = 0 : i64, scratch_operands = 0 : i64, tpu.core_type = #tpu.core_type<tc>, window_params = [{transform_indices = @transform_0, window_bounds = array<i64: 2, 64, 128>}, {pipeline_mode = #tpu.pipeline_mode<synchronous>, transform_indices = @transform_1, window_bounds = array<i64: 13, 64>}, {pipeline_mode = #tpu.pipeline_mode<synchronous>, transform_indices = @transform_2, window_bounds = array<i64: 13, 1>}, {transform_indices = @transform_3, window_bounds = array<i64: 2, 13, 128>}]} {
    %c0 = arith.constant 0 : index
    %c0_0 = arith.constant 0 : index
    %0 = vector.load %arg3[%c0, %c0_0] : memref<13x64xf32, #tpu.memory_space<vmem>>, vector<13x64xf32>
    %c0_1 = arith.constant 0 : index
    %c0_2 = arith.constant 0 : index
    %1 = vector.load %arg4[%c0_1, %c0_2] : memref<13x1xf32, #tpu.memory_space<vmem>>, vector<13x1xf32>
    %c0_3 = arith.constant 0 : index
    %c0_4 = arith.constant 0 : index
    %c0_5 = arith.constant 0 : index
    %2 = vector.load %arg2[%c0_3, %c0_4, %c0_5] : memref<2x64x128xf32, #tpu.memory_space<vmem>>, vector<1x64x128xf32>
    %3 = vector.shape_cast %2 : vector<1x64x128xf32> to vector<64x128xf32>
    %cst = arith.constant dense<0.000000e+00> : vector<13x128xf32>
    %4 = tpu.matmul %0, %3, %cst {dimension_numbers = #tpu.dot_dimension_numbers<[1], [0], [0], [1], [0, 0, 1, 1], [], []>} : vector<13x64xf32>, vector<64x128xf32>, vector<13x128xf32> -> vector<13x128xf32>
    %5 = vector.broadcast %1 : vector<13x1xf32> to vector<13x128xf32>
    %6 = arith.addf %4, %5 : vector<13x128xf32>
    %c0_6 = arith.constant 0 : index
    %c0_7 = arith.constant 0 : index
    %c0_8 = arith.constant 0 : index
    %7 = vector.load %arg5[%c0_6, %c0_7, %c0_8] : memref<2x13x128xf32, #tpu.memory_space<vmem>>, vector<1x13x128xf32>
    %8 = vector.shape_cast %7 : vector<1x13x128xf32> to vector<13x128xf32>
    %9 = vector.shape_cast %6 : vector<13x128xf32> to vector<1x13x128xf32>
    tpu.vector_store %arg5[%c0_6, %c0_7, %c0_8], %9 {strides = array<i32>} : memref<2x13x128xf32, #tpu.memory_space<vmem>>, vector<1x13x128xf32>,
    %c1 = arith.constant 1 : index
    %c0_9 = arith.constant 0 : index
    %c0_10 = arith.constant 0 : index
    %10 = vector.load %arg2[%c1, %c0_9, %c0_10] : memref<2x64x128xf32, #tpu.memory_space<vmem>>, vector<1x64x128xf32>
    %11 = vector.shape_cast %10 : vector<1x64x128xf32> to vector<64x128xf32>
    %cst_11 = arith.constant dense<0.000000e+00> : vector<13x128xf32>
    %12 = tpu.matmul %0, %11, %cst_11 {dimension_numbers = #tpu.dot_dimension_numbers<[1], [0], [0], [1], [0, 0, 1, 1], [], []>} : vector<13x64xf32>, vector<64x128xf32>, vector<13x128xf32> -> vector<13x128xf32>
    %13 = vector.broadcast %1 : vector<13x1xf32> to vector<13x128xf32>
    %14 = arith.addf %12, %13 : vector<13x128xf32>
    %c1_12 = arith.constant 1 : index
    %c0_13 = arith.constant 0 : index
    %c0_14 = arith.constant 0 : index
    %15 = vector.load %arg5[%c1_12, %c0_13, %c0_14] : memref<2x13x128xf32, #tpu.memory_space<vmem>>, vector<1x13x128xf32>
    %16 = vector.shape_cast %15 : vector<1x13x128xf32> to vector<13x128xf32>
    %17 = vector.shape_cast %14 : vector<13x128xf32> to vector<1x13x128xf32>
    tpu.vector_store %arg5[%c1_12, %c0_13, %c0_14], %17 {strides = array<i32>} : memref<2x13x128xf32, #tpu.memory_space<vmem>>, vector<1x13x128xf32>,
    return
  }
  func.func @transform_0(%arg0: i32, %arg1: i32) -> (i32, i32, i32) {
    %c0_i32 = arith.constant 0 : i32
    %c0_i32_0 = arith.constant 0 : i32
    return %arg0, %c0_i32, %arg1 : i32, i32, i32
  }
  func.func @transform_1(%arg0: i32, %arg1: i32) -> (i32, i32) {
    %c0_i32 = arith.constant 0 : i32
    %c0_i32_0 = arith.constant 0 : i32
    %c0_i32_1 = arith.constant 0 : i32
    return %c0_i32, %c0_i32_0 : i32, i32
  }
  func.func @transform_2(%arg0: i32, %arg1: i32) -> (i32, i32) {
    %c0_i32 = arith.constant 0 : i32
    %c0_i32_0 = arith.constant 0 : i32
    %c0_i32_1 = arith.constant 0 : i32
    return %c0_i32, %c0_i32_0 : i32, i32
  }
  func.func @transform_3(%arg0: i32, %arg1: i32) -> (i32, i32, i32) {
    %c0_i32 = arith.constant 0 : i32
    %c0_i32_0 = arith.constant 0 : i32
    return %arg0, %c0_i32, %arg1 : i32, i32, i32
  }
}

</mosaic_0001>

<llo_original>
// kernel: tpu_custom_call.1
$region0: #{tpu_custom_call.1}
  #allocation0 [shape = 'u32[]', space=smem, size = 0x4, offset = 0x4, fixed_abs, tag = 'smem constant byte address 0x4 - core index']
  #allocation1 [shape = 'u32[144,128]{1,0:T(1,128)}', space=vmem, size = 0x12000, scoped, tag = 'internal scratch']
  %s0 = inlined_call_operand.hbm [shape: f32[2,64,256], index: 0, kind: input, shape index: {}]
  %s1 = inlined_call_operand.vmem [shape: f32[13,64], index: 1, kind: input, shape index: {}]
  %s2 = inlined_call_operand.vmem [shape: f32[13,1], index: 2, kind: input, shape index: {}]
  %s3 = inlined_call_operand.vmem [shape: f32[2,13,256], index: 3, kind: output, shape index: {}]
  %s4 = sld [smem:[#allocation0]]
  $region83: #{tpu_custom_call.1} parent=0
    _
  %s6 = ssub.s32 1, %s4
  %s7 = scalar_select 0, %s6, %s4
  $region1: #{tpu_custom_call.1} parent=0
    #allocation2 [shape = 'u8[131072]{0}', space=vmem, size = 0x20000, scoped, tag = 'input window, operand 0']
    #allocation3 [shape = 's32[2]{0}', space=sflag, size = 0x8, scoped, tag = 'scoped memory for tpu_custom_call.1']
    #allocation4 [shape = 'u8[32768]{0}', space=vmem, size = 0x8000, scoped, tag = 'output window, operand 0']
    %8 = vsyncpa [#allocation3], 0
    %s9 = scalar_lea.sflag [#allocation3], 1
    %10 = vsyncpa %s9, 0
    loop: start=0, step=1, limit=4
    $region2: #{tpu_custom_call.1} parent=1 // loop_pre_header
      _
    $region3: #{tpu_custom_call.1} parent=1 // loop_header
      %s12 = sphi 0, %s16
      %p13 = scmp.ge.s32.totalorder %s12, 4
      %s19 = sphi 0, %s31
      %s20 = sphi 0, %s27
      %s21 = sphi 0, %s19
      %s22 = sphi 0, %s20
      %s23 = sphi 0, %s21
      %s24 = sphi 0, %s22
      %s36 = sphi 0, %s38
      %s39 = sphi 0, %s36
      %s40 = sphi 0, %s39
      %s56 = sphi 0, %s40
      %s60 = sphi 0, %s60
      %s62 = sphi 0, %s60
      %s63 = sphi 0, %s62
      %s77 = sphi 0, %s63
      %s81 = sphi 0, %s81
      %s83 = sphi 0, %s81
      %s84 = sphi 0, %s83
      %s98 = sphi 0, %s84
      %s106 = sphi 0, %s108
      %s109 = sphi 0, %s106
      %s110 = sphi 0, %s109
      %s126 = sphi 0, %s110
    $region4: #{tpu_custom_call.1} parent=1 // loop_header_branch
      %15 = sbr.rel (%p13) target = $region8
    $region5: #{tpu_custom_call.1} parent=1 // loop_body
      %s17 = ssub.s32 %s12, 1
      %s18 = ssub.s32 %s12, 2
      %s25 = sadd.s32 1, %s20
      %p26 = scmp.ge.s32.totalorder %s25, 2
      %s27 = scalar_select %p26, 0, %s25
      %s28 = sadd.s32 1, %s19
      %s29 = scalar_select %p26, %s28, %s19
      %p30 = scmp.ge.s32.totalorder %s29, 1
      %s31 = scalar_select %p30, 0, %s29
      %s32 = ssub.s32 %s19, %s31
      %s33 = ssub.s32 %s20, %s27
      %s34 = sor.u32 %s32, %s33
      %p35 = scmp.eq.s32.totalorder %s34, 0
      %s37 = sadd.s32 %s36, 1
      %s38 = scalar_select %p35, %s36, %s37
      %p41 = pneg %p35
      %p42 = scmp.eq.s32.totalorder %s12, 1
      %p43 = por %p41, %p42
      %p44 = scmp.ne.s32.totalorder %s36, %s39
      %p45 = scmp.eq.s32.totalorder %s12, 0
      %p46 = por %p44, %p45
      %p47 = scmp.ne.s32.totalorder %s36, %s39
      %p48 = scmp.eq.s32.totalorder %s17, 1
      %p49 = por %p47, %p48
      %p50 = scmp.ne.s32.totalorder %s39, %s40
      %p51 = scmp.eq.s32.totalorder %s17, 0
      %p52 = por %p50, %p51
      %p53 = scmp.ne.s32.totalorder %s39, %s40
      %p54 = scmp.eq.s32.totalorder %s18, 1
      %p55 = por %p53, %p54
      %p57 = scmp.ne.s32.totalorder %s40, %s56
      %p58 = scmp.eq.s32.totalorder %s18, 0
      %p59 = por %p57, %p58
      %s61 = sadd.s32 %s60, 1
      %p64 = scmp.eq.s32.totalorder %s12, 1
      %p65 = scmp.ne.s32.totalorder %s60, %s62
      %p66 = scmp.eq.s32.totalorder %s12, 0
      %p67 = por %p65, %p66
      %p68 = scmp.ne.s32.totalorder %s60, %s62
      %p69 = scmp.eq.s32.totalorder %s17, 1
      %p70 = por %p68, %p69
      %p71 = scmp.ne.s32.totalorder %s62, %s63
      %p72 = scmp.eq.s32.totalorder %s17, 0
      %p73 = por %p71, %p72
      %p74 = scmp.ne.s32.totalorder %s62, %s63
      %p75 = scmp.eq.s32.totalorder %s18, 1
      %p76 = por %p74, %p75
      %p78 = scmp.ne.s32.totalorder %s63, %s77
      %p79 = scmp.eq.s32.totalorder %s18, 0
      %p80 = por %p78, %p79
      %s82 = sadd.s32 %s81, 1
      %p85 = scmp.eq.s32.totalorder %s12, 1
      %p86 = scmp.ne.s32.totalorder %s81, %s83
      %p87 = scmp.eq.s32.totalorder %s12, 0
      %p88 = por %p86, %p87
      %p89 = scmp.ne.s32.totalorder %s81, %s83
      %p90 = scmp.eq.s32.totalorder %s17, 1
      %p91 = por %p89, %p90
      %p92 = scmp.ne.s32.totalorder %s83, %s84
      %p93 = scmp.eq.s32.totalorder %s17, 0
      %p94 = por %p92, %p93
      %p95 = scmp.ne.s32.totalorder %s83, %s84
      %p96 = scmp.eq.s32.totalorder %s18, 1
      %p97 = por %p95, %p96
      %p99 = scmp.ne.s32.totalorder %s84, %s98
      %p100 = scmp.eq.s32.totalorder %s18, 0
      %p101 = por %p99, %p100
      %s102 = ssub.s32 %s19, %s31
      %s103 = ssub.s32 %s20, %s27
      %s104 = sor.u32 %s102, %s103
      %p105 = scmp.eq.s32.totalorder %s104, 0
      %s107 = sadd.s32 %s106, 1
      %s108 = scalar_select %p105, %s106, %s107
      %p111 = pneg %p105
      %p112 = scmp.eq.s32.totalorder %s12, 1
      %p113 = por %p111, %p112
      %p114 = scmp.ne.s32.totalorder %s106, %s109
      %p115 = scmp.eq.s32.totalorder %s12, 0
      %p116 = por %p114, %p115
      %p117 = scmp.ne.s32.totalorder %s106, %s109
      %p118 = scmp.eq.s32.totalorder %s17, 1
      %p119 = por %p117, %p118
      %p120 = scmp.ne.s32.totalorder %s109, %s110
      %p121 = scmp.eq.s32.totalorder %s17, 0
      %p122 = por %p120, %p121
      %p123 = scmp.ne.s32.totalorder %s109, %s110
      %p124 = scmp.eq.s32.totalorder %s18, 1
      %p125 = por %p123, %p124
      %p127 = scmp.ne.s32.totalorder %s110, %s126
      %p128 = scmp.eq.s32.totalorder %s18, 0
      %p129 = por %p127, %p128
      %p130 = scmp.le.s32.totalorder 1, %s12
      %p131 = scmp.lt.s32.totalorder %s12, 3
      %p132 = pnand %p130, %p131
      %p133 = pneg %p132
      // Predicated region
      $region9: #{tpu_custom_call.1} parent=5 // pred_check
        _
      $region10: #{tpu_custom_call.1} parent=5 // pred_check_branch
        %135 = sbr.rel (%p132) target = $region12
      $region11: #{tpu_custom_call.1} parent=5 // pred_region
        %s136 = ssub.s32 %s12, 1
        // Predicated region
        $region13: #{tpu_custom_call.1} parent=11 // pred_check
          %p137 = pneg %p73
        $region14: #{tpu_custom_call.1} parent=11 // pred_check_branch
          %139 = sbr.rel (%p137) target = $region16
        $region15: #{tpu_custom_call.1} parent=11 // pred_region
          _
        $region16: #{tpu_custom_call.1} parent=11 // pred_fallthru
          _
        // Predicated region
        $region17: #{tpu_custom_call.1} parent=11 // pred_check
          %p140 = pneg %p94
        $region18: #{tpu_custom_call.1} parent=11 // pred_check_branch
          %142 = sbr.rel (%p140) target = $region20
        $region19: #{tpu_custom_call.1} parent=11 // pred_region
          _
        $region20: #{tpu_custom_call.1} parent=11 // pred_fallthru
          _
      $region12: #{tpu_custom_call.1} parent=5 // pred_fallthru
        _
      %p143 = scmp.lt.s32.totalorder %s12, 2
      // Predicated region
      $region21: #{tpu_custom_call.1} parent=5 // pred_check
        %p144 = pneg %p143
      $region22: #{tpu_custom_call.1} parent=5 // pred_check_branch
        %146 = sbr.rel (%p144) target = $region24
      $region23: #{tpu_custom_call.1} parent=5 // pred_region
        // Predicated region
        $region25: #{tpu_custom_call.1} parent=23 // pred_check
          %p147 = pneg %p46
        $region26: #{tpu_custom_call.1} parent=23 // pred_check_branch
          %149 = sbr.rel (%p147) target = $region28
        $region27: #{tpu_custom_call.1} parent=23 // pred_region
          %s150 = sand.u32 %s36, 1
          %s151 = scalar_lea.sflag [#allocation3], %s150
          %s152 = sand.u32 %s36, 1
          %s153 = smul.addr %s152, 128
          %s154 = scalar_lea.vmem [#allocation2], %s153
          %s155 = smul.u32 2, %s19
          %s157 = ssub.s32 2048, 2048
          %158 = vsyncadd %s151, %s157
          %s159 = smul.addr %s155, 16
          %s160 = sadd.s32 %s20, %s159
          %s161 = smul.addr %s160, 128
          %s162 = scalar_lea.hbm %s0, %s161
          %s163 = sshll.u32 %s154, 4
          %s164 = int_to_ptr.vmem [resolvable:$true] %s163
          %169 = dma.hbm_to_vmem [thread:$0]  %s162, 2048, %s164, %s151, 256, 128, 8
        $region28: #{tpu_custom_call.1} parent=23 // pred_fallthru
          _
      $region24: #{tpu_custom_call.1} parent=5 // pred_fallthru
        _
      %p170 = scmp.le.s32.totalorder 1, %s12
      %p171 = scmp.lt.s32.totalorder %s12, 3
      %p172 = pnand %p170, %p171
      %p173 = pneg %p172
      // Predicated region
      $region29: #{tpu_custom_call.1} parent=5 // pred_check
        _
      $region30: #{tpu_custom_call.1} parent=5 // pred_check_branch
        %175 = sbr.rel (%p172) target = $region32
      $region31: #{tpu_custom_call.1} parent=5 // pred_region
        %s176 = ssub.s32 %s12, 1
        %s177 = sand.u32 %s39, 1
        %s178 = scalar_lea.sflag [#allocation3], %s177
        %s179 = sand.u32 %s39, 1
        %s180 = smul.addr %s179, 128
        %s181 = scalar_lea.vmem [#allocation2], %s180
        // Predicated region
        $region33: #{tpu_custom_call.1} parent=31 // pred_check
          %p182 = pneg %p52
        $region34: #{tpu_custom_call.1} parent=31 // pred_check_branch
          %184 = sbr.rel (%p182) target = $region36
        $region35: #{tpu_custom_call.1} parent=31 // pred_region
          %185 = dma.done %s178, 2048
        $region36: #{tpu_custom_call.1} parent=31 // pred_fallthru
          _
        %s186 = sand.u32 %s39, 1
        %s187 = scalar_lea.sflag [#allocation3], %s186
        %s188 = sand.u32 %s39, 1
        %s189 = smul.addr %s188, 128
        %s190 = scalar_lea.vmem [#allocation2], %s189
        %p191 = pneg %p52
        %p192 = pneg %p49
        %p193 = pneg %p73
        %p194 = pneg %p70
        %p195 = pneg %p94
        %p196 = pneg %p91
        %p197 = pneg %p122
        %p198 = pneg %p119
        %s199 = sand.u32 %s109, 1
        %s200 = sand.u32 %s109, 1
        %s201 = smul.addr %s200, 32
        %s202 = scalar_lea.vmem [#allocation4], %s201
        %s203 = smul.u32 2, %s21
        %s204 = smul.u32 2, %s21
        %v205 = vld [vmem:[%s1] sm:$0xff]
        %v206 = vld [vmem:[%s1 + $0x8] sm:$0x1f]
        %v207 = vld [vmem:[%s2] sm:$0xff]
        %v208 = vld [vmem:[%s2 + $0x8] sm:$0x1f]
        %v209 = vld [vmem:[%s181] sm:$0xff]
        %v210 = vld [vmem:[%s181 + $0x8] sm:$0xff]
        %v211 = vld [vmem:[%s181 + $0x10] sm:$0xff]
        %v212 = vld [vmem:[%s181 + $0x18] sm:$0xff]
        %v213 = vld [vmem:[%s181 + $0x20] sm:$0xff]
        %v214 = vld [vmem:[%s181 + $0x28] sm:$0xff]
        %v215 = vld [vmem:[%s181 + $0x30] sm:$0xff]
        %v216 = vld [vmem:[%s181 + $0x38] sm:$0xff]
        %218 = vset.pattern.permute.xlu0 0
        %219 = vperm.xlu0 %218, %v207
        %v220 = vpop.permute.xlu0 %219
        %223 = vset.pattern.permute.xlu0 0
        %224 = vperm.xlu0 %223, %v208
        %v225 = vpop.permute.xlu0 %224
        %vm227 = vcmask 523264
        %v229 = vsel %vm227, %v205, 0
        %v232 = vsel %vm227, %v206, 0
        %234 = vmatprep.subr.mxu0 0.0
        %235 = vmatpush1.msra.mxu0 0.0
        %236 = vmatprep.subr.mxu0 0.0
        %237 = vmatpush1.msra.mxu0 0.0
        %238 = vmatprep.subr.mxu0 0.0
        %239 = vmatpush1.msra.mxu0 0.0
        %240 = vmatprep.subr.mxu0 0.0
        %241 = vmatpush1.msra.mxu0 0.0
        %242 = vmatprep.subr.mxu0 0.0
        %243 = vmatpush1.msra.mxu0 0.0
        %244 = vmatprep.subr.mxu0 0.0
        %245 = vmatpush1.msra.mxu0 0.0
        %246 = vmatprep.subr.mxu0 0.0
        %247 = vmatpush1.msra.mxu0 0.0
        %248 = vmatprep.subr.mxu0 0.0
        %249 = vmatpush1.msra.mxu0 0.0
        %250 = vmatprep.subr.mxu0 0.0
        %251 = vmatpush1.msra.mxu0 %v216
        %252 = vmatprep.subr.mxu0 0.0
        %253 = vmatpush1.msra.mxu0 %v215
        %254 = vmatprep.subr.mxu0 0.0
        %255 = vmatpush1.msra.mxu0 %v214
        %256 = vmatprep.subr.mxu0 0.0
        %257 = vmatpush1.msra.mxu0 %v213
        %258 = vmatprep.subr.mxu0 0.0
        %259 = vmatpush1.msra.mxu0 %v212
        %260 = vmatprep.subr.mxu0 0.0
        %261 = vmatpush1.msra.mxu0 %v211
        %262 = vmatprep.subr.mxu0 0.0
        %263 = vmatpush1.msra.mxu0 %v210
        %264 = vmatprep.subr.mxu0 0.0
        %265 = vmatpush1.msra.mxu0 %v209
        %266 = vmatprep.subr.mxu0 0.0
        %267 = vmatpush2.msra.mxu0 0.0
        %268 = vmatprep.subr.mxu0 0.0
        %269 = vmatpush2.msra.mxu0 0.0
        %270 = vmatprep.subr.mxu0 0.0
        %271 = vmatpush2.msra.mxu0 0.0
        %272 = vmatprep.subr.mxu0 0.0
        %273 = vmatpush2.msra.mxu0 0.0
        %274 = vmatprep.subr.mxu0 0.0
        %275 = vmatpush2.msra.mxu0 0.0
        %276 = vmatprep.subr.mxu0 0.0
        %277 = vmatpush2.msra.mxu0 0.0
        %278 = vmatprep.subr.mxu0 0.0
        %279 = vmatpush2.msra.mxu0 0.0
        %280 = vmatprep.subr.mxu0 0.0
        %281 = vmatpush2.msra.mxu0 0.0
        %282 = vmatprep.subr.mxu0 0.0
        %283 = vmatpush2.msra.mxu0 0.0
        %284 = vmatprep.subr.mxu0 0.0
        %285 = vmatpush2.msra.mxu0 0.0
        %286 = vmatprep.subr.mxu0 0.0
        %287 = vmatpush2.msra.mxu0 0.0
        %288 = vmatprep.subr.mxu0 0.0
        %289 = vmatpush2.msra.mxu0 0.0
        %290 = vmatprep.subr.mxu0 0.0
        %291 = vmatpush2.msra.mxu0 0.0
        %292 = vmatprep.subr.mxu0 0.0
        %293 = vmatpush2.msra.mxu0 0.0
        %294 = vmatprep.subr.mxu0 0.0
        %295 = vmatpush2.msra.mxu0 0.0
        %296 = vmatprep.subr.mxu0 0.0
        %297 = vmatpush2.msra.mxu0 0.0
        %298 = vmatprep.mubr.f32.mxu0 0.0
        %299 = vmatmul.mubr.f32.gmra.mxu0 %v229
        %v300 = vpop.f32.mrf.mxu0
        %v301 = vadd.f32 %v220, %v300
        %v302 = vpop.f32.mrf.mxu0
        %303 = vmatprep.mubr.f32.mxu0 0.0
        %304 = vmatmul.mubr.f32.gmra.mxu0 %v232
        %v305 = vpop.f32.mrf.mxu0
        %v306 = vadd.f32 %v225, %v305
        %v307 = vpop.f32.mrf.mxu0
        %308 = vdwg.mxu0
        %309 = vst [vmem:[%s202] sm:$0xff] %v301
        %310 = vst [vmem:[%s202 + $0x8] sm:$0x1f] %v306
        %s311 = scalar_lea.vmem %s181, 64 [#allocation2]
        %v312 = vld [vmem:[%s311] sm:$0xff]
        %v313 = vld [vmem:[%s311 + $0x8] sm:$0xff]
        %v314 = vld [vmem:[%s311 + $0x10] sm:$0xff]
        %v315 = vld [vmem:[%s311 + $0x18] sm:$0xff]
        %v316 = vld [vmem:[%s311 + $0x20] sm:$0xff]
        %v317 = vld [vmem:[%s311 + $0x28] sm:$0xff]
        %v318 = vld [vmem:[%s311 + $0x30] sm:$0xff]
        %v319 = vld [vmem:[%s311 + $0x38] sm:$0xff]
        %320 = vmatprep.subr.mxu0 0.0
        %321 = vmatpush1.msra.mxu0 0.0
        %322 = vmatprep.subr.mxu0 0.0
        %323 = vmatpush1.msra.mxu0 0.0
        %324 = vmatprep.subr.mxu0 0.0
        %325 = vmatpush1.msra.mxu0 0.0
        %326 = vmatprep.subr.mxu0 0.0
        %327 = vmatpush1.msra.mxu0 0.0
        %328 = vmatprep.subr.mxu0 0.0
        %329 = vmatpush1.msra.mxu0 0.0
        %330 = vmatprep.subr.mxu0 0.0
        %331 = vmatpush1.msra.mxu0 0.0
        %332 = vmatprep.subr.mxu0 0.0
        %333 = vmatpush1.msra.mxu0 0.0
        %334 = vmatprep.subr.mxu0 0.0
        %335 = vmatpush1.msra.mxu0 0.0
        %336 = vmatprep.subr.mxu0 0.0
        %337 = vmatpush1.msra.mxu0 %v319
        %338 = vmatprep.subr.mxu0 0.0
        %339 = vmatpush1.msra.mxu0 %v318
        %340 = vmatprep.subr.mxu0 0.0
        %341 = vmatpush1.msra.mxu0 %v317
        %342 = vmatprep.subr.mxu0 0.0
        %343 = vmatpush1.msra.mxu0 %v316
        %344 = vmatprep.subr.mxu0 0.0
        %345 = vmatpush1.msra.mxu0 %v315
        %346 = vmatprep.subr.mxu0 0.0
        %347 = vmatpush1.msra.mxu0 %v314
        %348 = vmatprep.subr.mxu0 0.0
        %349 = vmatpush1.msra.mxu0 %v313
        %350 = vmatprep.subr.mxu0 0.0
        %351 = vmatpush1.msra.mxu0 %v312
        %352 = vmatprep.subr.mxu0 0.0
        %353 = vmatpush2.msra.mxu0 0.0
        %354 = vmatprep.subr.mxu0 0.0
        %355 = vmatpush2.msra.mxu0 0.0
        %356 = vmatprep.subr.mxu0 0.0
        %357 = vmatpush2.msra.mxu0 0.0
        %358 = vmatprep.subr.mxu0 0.0
        %359 = vmatpush2.msra.mxu0 0.0
        %360 = vmatprep.subr.mxu0 0.0
        %361 = vmatpush2.msra.mxu0 0.0
        %362 = vmatprep.subr.mxu0 0.0
        %363 = vmatpush2.msra.mxu0 0.0
        %364 = vmatprep.subr.mxu0 0.0
        %365 = vmatpush2.msra.mxu0 0.0
        %366 = vmatprep.subr.mxu0 0.0
        %367 = vmatpush2.msra.mxu0 0.0
        %368 = vmatprep.subr.mxu0 0.0
        %369 = vmatpush2.msra.mxu0 0.0
        %370 = vmatprep.subr.mxu0 0.0
        %371 = vmatpush2.msra.mxu0 0.0
        %372 = vmatprep.subr.mxu0 0.0
        %373 = vmatpush2.msra.mxu0 0.0
        %374 = vmatprep.subr.mxu0 0.0
        %375 = vmatpush2.msra.mxu0 0.0
        %376 = vmatprep.subr.mxu0 0.0
        %377 = vmatpush2.msra.mxu0 0.0
        %378 = vmatprep.subr.mxu0 0.0
        %379 = vmatpush2.msra.mxu0 0.0
        %380 = vmatprep.subr.mxu0 0.0
        %381 = vmatpush2.msra.mxu0 0.0
        %382 = vmatprep.subr.mxu0 0.0
        %383 = vmatpush2.msra.mxu0 0.0
        %384 = vmatprep.mubr.f32.mxu0 0.0
        %385 = vmatmul.mubr.f32.gmra.mxu0 %v229
        %v386 = vpop.f32.mrf.mxu0
        %v387 = vadd.f32 %v220, %v386
        %v388 = vpop.f32.mrf.mxu0
        %389 = vmatprep.mubr.f32.mxu0 0.0
        %390 = vmatmul.mubr.f32.gmra.mxu0 %v232
        %v391 = vpop.f32.mrf.mxu0
        %v392 = vadd.f32 %v225, %v391
        %v393 = vpop.f32.mrf.mxu0
        %394 = vdwg.mxu0
        %s395 = scalar_lea.vmem %s202, 16 [#allocation4]
        %396 = vst [vmem:[%s395] sm:$0xff] %v387
        %397 = vst [vmem:[%s395 + $0x8] sm:$0x1f] %v392
        %s398 = sand.u32 %s109, 1
        %s399 = sand.u32 %s109, 1
        %s400 = smul.addr %s399, 32
        %s401 = scalar_lea.vmem [#allocation4], %s400
        // Predicated region
        $region37: #{tpu_custom_call.1} parent=31 // pred_check
          %p402 = pneg %p119
        $region38: #{tpu_custom_call.1} parent=31 // pred_check_branch
          %404 = sbr.rel (%p402) target = $region40
        $region39: #{tpu_custom_call.1} parent=31 // pred_region
          %s405 = smul.u32 2, %s21
          %s406 = smul.addr %s405, 4
          %s407 = sadd.s32 %s22, %s406
          %s408 = smul.addr %s407, 8
          %s409 = scalar_lea.vmem %s3, %s408
          // Predicated region
          $region41: #{tpu_custom_call.1} parent=39 // pred_check
            _
          $region42: #{tpu_custom_call.1} parent=39 // pred_check_branch
            %411 = sbr.rel (0) target = $region44
          $region43: #{tpu_custom_call.1} parent=39 // pred_region
            // Predicated region
            $region45: #{tpu_custom_call.1} parent=43 // pred_check
              _
            $region46: #{tpu_custom_call.1} parent=43 // pred_check_branch
              %413 = sbr.rel (0) target = $region48
            $region47: #{tpu_custom_call.1} parent=43 // pred_region
              // Predicated region
              $region60: #{tpu_custom_call.1} parent=47 // pred_check
                _
              $region61: #{tpu_custom_call.1} parent=47 // pred_check_branch
                %435 = sbr.rel (0) target = $region63
              $region62: #{tpu_custom_call.1} parent=47 // pred_region
                loop: start=0, step=1, limit=1
                $region64: #{tpu_custom_call.1} parent=62 // loop_pre_header
                  _
                $region65: #{tpu_custom_call.1} parent=62 // loop_header
                  %s437 = sphi 0, %s441
                  %p438 = scmp.ge.s32.totalorder %s437, 1
                  %s442 = sphi %s401, %s401
                  %s443 = sphi %s409, %s409
                $region66: #{tpu_custom_call.1} parent=62 // loop_header_branch
                  %440 = sbr.rel (%p438) target = $region70
                $region67: #{tpu_custom_call.1} parent=62 // loop_body
                  %v444 = vld [vmem:[%s442] sm:$0xff]
                  %445 = vst [vmem:[%s443] sm:$0xff] %v444
                  %v446 = vld [vmem:[%s442 + $0x8] sm:$0xff]
                  %447 = vst [vmem:[%s443 + $0x10] sm:$0xff] %v446
                  %v448 = vld [vmem:[%s442 + $0x10] sm:$0xff]
                  %449 = vst [vmem:[%s443 + $0x20] sm:$0xff] %v448
                  %v450 = vld [vmem:[%s442 + $0x18] sm:$0xff]
                  %451 = vst [vmem:[%s443 + $0x30] sm:$0xff] %v450
                $region68: #{tpu_custom_call.1} parent=62 // loop_footer
                  %s441 = sadd.s32 1, %s437
                $region69: #{tpu_custom_call.1} parent=62 // loop_footer_branch
                  %436 = sbr.rel target = $region65
                $region70: #{tpu_custom_call.1} parent=62 // loop_exit
                  _
              $region63: #{tpu_custom_call.1} parent=47 // pred_fallthru
                _
              // Predicated region
              $region71: #{tpu_custom_call.1} parent=47 // pred_check
                _
              $region72: #{tpu_custom_call.1} parent=47 // pred_check_branch
                %453 = sbr.rel target = $region74
              $region73: #{tpu_custom_call.1} parent=47 // pred_region
                _
              $region74: #{tpu_custom_call.1} parent=47 // pred_fallthru
                _
            $region48: #{tpu_custom_call.1} parent=43 // pred_fallthru
              _
            // Predicated region
            $region49: #{tpu_custom_call.1} parent=43 // pred_check
              _
            $region50: #{tpu_custom_call.1} parent=43 // pred_check_branch
              %415 = sbr.rel target = $region52
            $region51: #{tpu_custom_call.1} parent=43 // pred_region
              %s417 = ssub.s32 256, 1
              loop: start=0, step=1, limit=1
              $region53: #{tpu_custom_call.1} parent=51 // loop_pre_header
                _
              $region54: #{tpu_custom_call.1} parent=51 // loop_header
                %s419 = sphi 0, %s423
                %p420 = scmp.ge.s32.totalorder %s419, 1
                %s424 = sphi %s401, %s401
                %s425 = sphi %s409, %s409
              $region55: #{tpu_custom_call.1} parent=51 // loop_header_branch
                %422 = sbr.rel (%p420) target = $region59
              $region56: #{tpu_custom_call.1} parent=51 // loop_body
                %v426 = vld [vmem:[%s424] sm:%s417]
                %427 = vst [vmem:[%s425] sm:%s417] %v426
                %v428 = vld [vmem:[%s424 + $0x8] sm:%s417]
                %429 = vst [vmem:[%s425 + $0x10] sm:%s417] %v428
                %v430 = vld [vmem:[%s424 + $0x10] sm:%s417]
                %431 = vst [vmem:[%s425 + $0x20] sm:%s417] %v430
                %v432 = vld [vmem:[%s424 + $0x18] sm:%s417]
                %433 = vst [vmem:[%s425 + $0x30] sm:%s417] %v432
              $region57: #{tpu_custom_call.1} parent=51 // loop_footer
                %s423 = sadd.s32 1, %s419
              $region58: #{tpu_custom_call.1} parent=51 // loop_footer_branch
                %418 = sbr.rel target = $region54
              $region59: #{tpu_custom_call.1} parent=51 // loop_exit
                _
            $region52: #{tpu_custom_call.1} parent=43 // pred_fallthru
              _
          $region44: #{tpu_custom_call.1} parent=39 // pred_fallthru
            _
          %454 = vnop
        $region40: #{tpu_custom_call.1} parent=31 // pred_fallthru
          _
      $region32: #{tpu_custom_call.1} parent=5 // pred_fallthru
        _
      %p455 = scmp.le.s32.totalorder 2, %s12
      // Predicated region
      $region75: #{tpu_custom_call.1} parent=5 // pred_check
        %p456 = pneg %p455
      $region76: #{tpu_custom_call.1} parent=5 // pred_check_branch
        %458 = sbr.rel (%p456) target = $region78
      $region77: #{tpu_custom_call.1} parent=5 // pred_region
        %s459 = ssub.s32 %s12, 2
        // Predicated region
        $region79: #{tpu_custom_call.1} parent=77 // pred_check
          %p460 = pneg %p125
        $region80: #{tpu_custom_call.1} parent=77 // pred_check_branch
          %462 = sbr.rel (%p460) target = $region82
        $region81: #{tpu_custom_call.1} parent=77 // pred_region
          %s463 = sand.u32 %s110, 1
          %s464 = sand.u32 %s110, 1
          %s465 = smul.addr %s464, 32
          %s466 = scalar_lea.vmem [#allocation4], %s465
        $region82: #{tpu_custom_call.1} parent=77 // pred_fallthru
          _
      $region78: #{tpu_custom_call.1} parent=5 // pred_fallthru
        _
    $region6: #{tpu_custom_call.1} parent=1 // loop_footer
      %s16 = sadd.s32 1, %s12
    $region7: #{tpu_custom_call.1} parent=1 // loop_footer_branch
      %11 = sbr.rel target = $region3
    $region8: #{tpu_custom_call.1} parent=1 // loop_exit
      _
    %467 = vsyncpa [#allocation3], 1
    %s468 = scalar_lea.sflag [#allocation3], 1
    %469 = vsyncpa %s468, 1

</llo_original>
